<compile_context>
chip_gen: v7x
topology: tpu7x:2x2x1
jax: 0.10.0
libtpu: 0.0.40
codegen_flags: <defaults>
</compile_context>

<pallas_src>
import math

import jax
import jax.numpy as jnp
from jax import lax
from jax.experimental import pallas as pl
from jax.experimental.pallas import tpu as pltpu

_GAMMA = 0.1
_LANES = 128
_SUBLANES = 8


def _round_up(x, m):
    return ((x + m - 1) // m) * m


def _tile_partial(o_ref, l_ref, row0, *, chunk, n_chunks, valid_rows, masked):
    """Fold one (tile_r, 128) tile of loss*adj into an (8,128) f32 partial.

    Processes `chunk`-row slices inside a fori_loop so only a handful of vregs
    are live (no tile-sized temporaries)."""

    def body(c, acc):
        r = c * chunk
        o = o_ref[pl.ds(pl.multiple_of(r, chunk), chunk), :].astype(jnp.float32)
        l = l_ref[pl.ds(pl.multiple_of(r, chunk), chunk), :].astype(jnp.float32)
        if masked:
            # Mask the INPUTS (not the product): OOB rows of the ragged last
            # tile hold unspecified bits (possibly NaN/Inf) and must not
            # reach any arithmetic.
            rows = lax.broadcasted_iota(jnp.int32, (chunk, _LANES), 0)
            keep = (rows + (row0 + r)) < valid_rows
            o = jnp.where(keep, o, 0.0)
            l = jnp.where(keep, l, 0.0)
        diff = o - l
        loss = diff * diff
        prod = o * l
        # prod > 0 -> gamma ; prod < 0 -> 1 + gamma ; prod == 0 -> 0 (= prod).
        # NaN falls through both compares, matching PyTorch's masked assigns.
        adj = jnp.where(prod > 0, jnp.float32(_GAMMA),
                        jnp.where(prod < 0, jnp.float32(1.0 + _GAMMA), prod))
        w = loss * adj
        # Fold rows in sublane-aligned groups of 8: pure VPU adds, no XLU.
        return acc + w.reshape(chunk // _SUBLANES, _SUBLANES, _LANES).sum(axis=0)

    acc0 = jnp.zeros((_SUBLANES, _LANES), jnp.float32)
    unroll = 4 if n_chunks >= 4 else True
    return lax.fori_loop(0, n_chunks, body, acc0, unroll=unroll)


def _make_partials_kernel(tile_r, chunk, valid_rows, num_tiles):
    """Per-tile (8,128) partials output; safe everywhere, shardable on v7x."""
    n_chunks = tile_r // chunk
    needs_mask = (valid_rows % tile_r) != 0

    def kernel(o_ref, l_ref, res_ref):
        pid = pl.program_id(0)
        row0 = pid * tile_r

        def emit(masked):
            def _go():
                res_ref[0, :, :] = _tile_partial(
                    o_ref, l_ref, row0, chunk=chunk, n_chunks=n_chunks,
                    valid_rows=valid_rows, masked=masked)
            return _go

        if not needs_mask:
            emit(False)()
        else:
            pl.when(pid == num_tiles - 1)(emit(True))
            pl.when(pid < num_tiles - 1)(emit(False))

    return kernel


def _make_accum_kernel(tile_r, chunk, valid_rows, num_tiles):
    """Single resident (8,128) accumulator output (single-TC chips)."""
    n_chunks = tile_r // chunk
    needs_mask = (valid_rows % tile_r) != 0

    def kernel(o_ref, l_ref, res_ref):
        pid = pl.program_id(0)
        row0 = pid * tile_r

        @pl.when(pid == 0)
        def _init():
            res_ref[...] = jnp.zeros_like(res_ref)

        def emit(masked):
            def _go():
                res_ref[...] += _tile_partial(
                    o_ref, l_ref, row0, chunk=chunk, n_chunks=n_chunks,
                    valid_rows=valid_rows, masked=masked)
            return _go

        if not needs_mask:
            emit(False)()
        else:
            pl.when(pid == num_tiles - 1)(emit(True))
            pl.when(pid < num_tiles - 1)(emit(False))

    return kernel


def _chip_config():
    try:
        kind = jax.devices()[0].device_kind.lower()
    except Exception:
        kind = ""
    is_v7 = ("v7" in kind) or ("7x" in kind)
    is_v6e = ("v6e" in kind) or ("v6 lite" in kind) or ("v6lite" in kind)
    is_v5e = ("v5e" in kind) or ("v5 lite" in kind) or ("v5lite" in kind)
    single_tc = is_v5e or is_v6e
    if is_v7:
        tile_rows, vmem_limit = 8192, 48 * 1024 * 1024
    elif is_v6e:
        tile_rows, vmem_limit = 8192, None
    else:  # v5e / v5p / v4 / unknown: conservative tile, default scoped VMEM
        tile_rows, vmem_limit = 4096, None
    return single_tc, tile_rows, vmem_limit


def adj_mse_loss_3(outputs, labels, *, tile_rows=None, multi_core=None):
    """Pallas TPU implementation of AdjMSELoss3.forward.

    outputs: (N, 1) or (N,) float array (squeezed like torch.squeeze)
    labels : (N,)   float array
    returns: scalar float32 (mean of adjusted squared error)
    """
    outputs = jnp.squeeze(outputs)
    labels = jnp.squeeze(labels)
    assert outputs.shape == labels.shape and outputs.ndim == 1, (
        outputs.shape, labels.shape)
    n = outputs.shape[0]

    single_tc, default_tile, vmem_limit = _chip_config()
    if multi_core is None:
        multi_core = not single_tc      # v7x (and unknown chips) -> partials
    if tile_rows is None:
        tile_rows = default_tile

    valid_rows = pl.cdiv(n, _LANES)
    rem = n % _LANES
    if rem:
        # Minimal pad to one full lane row. Zero padding is exact (o = l = 0
        # -> loss = 0, adj = 0); we divide by the true N below.
        # TODO(synk): this path still copies both arrays once; a fully
        # copy-free N % 128 != 0 path needs 1-D blocks + in-kernel reshape.
        pad = _LANES - rem
        outputs = jnp.pad(outputs, (0, pad))
        labels = jnp.pad(labels, (0, pad))
    # Reshape to (rows, 128) is metadata-only (no extra HBM traffic).
    o2d = outputs.reshape(valid_rows, _LANES)
    l2d = labels.reshape(valid_rows, _LANES)

    # Tile rows: multiple of 16 (meets f32 (8,128) and bf16 (16,128) tiling),
    # capped near the real row count so tiny inputs stay tiny.
    tile_r = max(16, min(int(tile_rows), _round_up(valid_rows, 16)))
    tile_r = _round_up(tile_r, 16)
    num_tiles = pl.cdiv(valid_rows, tile_r)
    chunk = math.gcd(tile_r, 64)            # 16..64 rows, divides tile_r

    in_specs = [
        pl.BlockSpec((tile_r, _LANES), lambda i: (i, 0)),
        pl.BlockSpec((tile_r, _LANES), lambda i: (i, 0)),
    ]
    cp_kwargs = {}
    if vmem_limit is not None:
        cp_kwargs["vmem_limit_bytes"] = vmem_limit

    if multi_core:
        # Per-tile partials so multiple TensorCores write disjoint blocks.
        # TODO(synk): if an xprof trace shows only one v7x TC busy, switch this
        # axis to pltpu.CORE_PARALLEL.
        kernel = _make_partials_kernel(tile_r, chunk, valid_rows, num_tiles)
        partials = pl.pallas_call(
            kernel,
            out_shape=jax.ShapeDtypeStruct((num_tiles, _SUBLANES, _LANES),
                                           jnp.float32),
            grid=(num_tiles,),
            in_specs=in_specs,
            out_specs=pl.BlockSpec((1, _SUBLANES, _LANES),
                                   lambda i: (i, 0, 0)),
            compiler_params=pltpu.CompilerParams(
                dimension_semantics=("parallel",), **cp_kwargs),
        )(o2d, l2d)
        total = jnp.sum(partials)
    else:
        # Single-TC chips: accumulate into one resident (8,128) output block.
        kernel = _make_accum_kernel(tile_r, chunk, valid_rows, num_tiles)
        acc = pl.pallas_call(
            kernel,
            out_shape=jax.ShapeDtypeStruct((_SUBLANES, _LANES), jnp.float32),
            grid=(num_tiles,),
            in_specs=in_specs,
            out_specs=pl.BlockSpec((_SUBLANES, _LANES), lambda i: (0, 0)),
            compiler_params=pltpu.CompilerParams(
                dimension_semantics=("arbitrary",), **cp_kwargs),
        )(o2d, l2d)
        total = jnp.sum(acc)

    # Tiny final reduce (<= num_tiles x 4 KiB) + mean over the TRUE N.
    return total / jnp.float32(n)


def _reference(outputs, labels):
    outputs = jnp.squeeze(outputs).astype(jnp.float32)
    labels = jnp.squeeze(labels).astype(jnp.float32)
    loss = (outputs - labels) ** 2
    adj = outputs * labels
    adj = jnp.where(adj > 0, _GAMMA, jnp.where(adj < 0, 1.0 + _GAMMA, adj))
    return jnp.mean(loss * adj)


if __name__ == "__main__":
    key = jax.random.PRNGKey(0)
    k1, k2, k3, k4 = jax.random.split(key, 4)

    # Case 1: f32, (N,1) model outputs, N % 128 != 0 -> minimal pad-to-128 +
    # in-kernel masking of the ragged last grid tile. Small tile_rows so the
    # grid has several steps; exercise BOTH kernel variants explicitly.
    N1 = 5000
    out1 = jax.random.normal(k1, (N1, 1), dtype=jnp.float32)
    lbl1 = jax.random.normal(k2, (N1,), dtype=jnp.float32)
    ref1 = jax.block_until_ready(_reference(out1, lbl1))
    r1a = jax.block_until_ready(
        adj_mse_loss_3(out1, lbl1, tile_rows=16, multi_core=False))
    r1b = jax.block_until_ready(
        adj_mse_loss_3(out1, lbl1, tile_rows=16, multi_core=True))
    assert jnp.allclose(r1a, ref1, rtol=1e-5, atol=1e-6), (r1a, ref1)
    assert jnp.allclose(r1b, ref1, rtol=1e-5, atol=1e-6), (r1b, ref1)

    # Case 2: bf16, N % 128 == 0 -> no pad copy at all; native-dtype DMA with
    # in-kernel f32 upcast; ragged last tile (49 rows, 16-row blocks) masked.
    N2 = 6272  # 49 * 128
    out2 = jax.random.normal(k3, (N2,), dtype=jnp.float32).astype(jnp.bfloat16)
    lbl2 = jax.random.normal(k4, (N2,), dtype=jnp.float32).astype(jnp.bfloat16)
    ref2 = jax.block_until_ready(_reference(out2, lbl2))
    r2 = jax.block_until_ready(adj_mse_loss_3(out2, lbl2, tile_rows=16))
    assert jnp.allclose(r2, ref2, rtol=1e-4, atol=1e-5), (r2, ref2)

    print("KERNEL_OK")
</pallas_src>

<mosaic_0001>
module attributes {stable_mosaic.version = 11 : i64} {
  func.func @kernel(%arg0: i32, %arg1: memref<16x128xf32, #tpu.memory_space<vmem>>, %arg2: memref<16x128xf32, #tpu.memory_space<vmem>>, %arg3: memref<8x128xf32, #tpu.memory_space<vmem>>) attributes {dimension_semantics = [#tpu.dimension_semantics<arbitrary>], iteration_bounds = array<i64: 3>, scalar_prefetch = 0 : i64, scratch_operands = 0 : i64, tpu.core_type = #tpu.core_type<tc>, window_params = [{transform_indices = @transform_0, window_bounds = array<i64: 16, 128>}, {transform_indices = @transform_1, window_bounds = array<i64: 16, 128>}, {pipeline_mode = #tpu.pipeline_mode<synchronous>, transform_indices = @transform_2, window_bounds = array<i64: 8, 128>}]} {
    %c16_i32 = arith.constant 16 : i32
    %0 = arith.muli %arg0, %c16_i32 : i32
    %c0_i32 = arith.constant 0 : i32
    %1 = arith.cmpi eq, %arg0, %c0_i32 : i32
    %2 = arith.extui %1 : i1 to i32
    %c0_i32_0 = arith.constant 0 : i32
    %3 = arith.cmpi ne, %2, %c0_i32_0 : i32
    scf.if %3 {
      %cst = arith.constant 0.000000e+00 : f32
      %10 = vector.broadcast %cst : f32 to vector<8x128xf32>
      %c0 = arith.constant 0 : index
      %c0_4 = arith.constant 0 : index
      %11 = vector.load %arg3[%c0, %c0_4] : memref<8x128xf32, #tpu.memory_space<vmem>>, vector<8x128xf32>
      tpu.vector_store %arg3[%c0, %c0_4], %10 {strides = array<i32>} : memref<8x128xf32, #tpu.memory_space<vmem>>, vector<8x128xf32>,
    } else {
    }
    %c2_i32 = arith.constant 2 : i32
    %4 = arith.cmpi eq, %arg0, %c2_i32 : i32
    %5 = arith.extui %4 : i1 to i32
    %c0_i32_1 = arith.constant 0 : i32
    %6 = arith.cmpi ne, %5, %c0_i32_1 : i32
    scf.if %6 {
      %c0 = arith.constant 0 : index
      %c0_4 = arith.constant 0 : index
      %10 = vector.load %arg3[%c0, %c0_4] : memref<8x128xf32, #tpu.memory_space<vmem>>, vector<8x128xf32>
      %cst = arith.constant 0.000000e+00 : f32
      %11 = vector.broadcast %cst : f32 to vector<8x128xf32>
      %c0_i32_5 = arith.constant 0 : i32
      %c16_i32_6 = arith.constant 16 : i32
      %12 = arith.muli %c0_i32_5, %c16_i32_6 : i32
      %13 = tpu.assume_multiple %12, 16 : i32
      %14 = arith.index_cast %13 : i32 to index
      %c0_7 = arith.constant 0 : index
      %15 = vector.load %arg1[%14, %c0_7] : memref<16x128xf32, #tpu.memory_space<vmem>>, vector<16x128xf32>
      %16 = tpu.assume_multiple %12, 16 : i32
      %17 = arith.index_cast %16 : i32 to index
      %c0_8 = arith.constant 0 : index
      %18 = vector.load %arg2[%17, %c0_8] : memref<16x128xf32, #tpu.memory_space<vmem>>, vector<16x128xf32>
      %19 = tpu.iota {dimensions = array<i32: 0>} : vector<16x128xi32>
      %20 = arith.addi %0, %12 : i32
      %21 = vector.broadcast %20 : i32 to vector<16x128xi32>
      %22 = arith.addi %19, %21 : vector<16x128xi32>
      %c40_i32 = arith.constant 40 : i32
      %23 = vector.broadcast %c40_i32 : i32 to vector<16x128xi32>
      %24 = arith.cmpi slt, %22, %23 : vector<16x128xi32>
      %cst_9 = arith.constant 0.000000e+00 : f32
      %25 = vector.broadcast %cst_9 : f32 to vector<16x128xf32>
      %26 = arith.select %24, %15, %25 : vector<16x128xi1>, vector<16x128xf32>
      %cst_10 = arith.constant 0.000000e+00 : f32
      %27 = vector.broadcast %cst_10 : f32 to vector<16x128xf32>
      %28 = arith.select %24, %18, %27 : vector<16x128xi1>, vector<16x128xf32>
      %29 = arith.subf %26, %28 : vector<16x128xf32>
      %30 = arith.mulf %29, %29 : vector<16x128xf32>
      %31 = arith.mulf %26, %28 : vector<16x128xf32>
      %cst_11 = arith.constant 0.000000e+00 : f32
      %32 = vector.broadcast %cst_11 : f32 to vector<16x128xf32>
      %33 = arith.cmpf ogt, %31, %32 : vector<16x128xf32>
      %cst_12 = arith.constant 0.000000e+00 : f32
      %34 = vector.broadcast %cst_12 : f32 to vector<16x128xf32>
      %35 = arith.cmpf olt, %31, %34 : vector<16x128xf32>
      %cst_13 = arith.constant 1.100000e+00 : f32
      %36 = vector.broadcast %cst_13 : f32 to vector<16x128xf32>
      %37 = arith.select %35, %36, %31 : vector<16x128xi1>, vector<16x128xf32>
      %cst_14 = arith.constant 1.000000e-01 : f32
      %38 = vector.broadcast %cst_14 : f32 to vector<16x128xf32>
      %39 = arith.select %33, %38, %37 : vector<16x128xi1>, vector<16x128xf32>
      %40 = arith.mulf %30, %39 : vector<16x128xf32>
      %41 = vector.shape_cast %40 : vector<16x128xf32> to vector<2x8x128xf32>
      %cst_15 = arith.constant dense<0.000000e+00> : vector<8x128xf32>
      %42 = vector.multi_reduction <add>, %41, %cst_15 [0] : vector<2x8x128xf32> to vector<8x128xf32>
      %43 = arith.addf %11, %42 : vector<8x128xf32>
      %c1_i32 = arith.constant 1 : i32
      %44 = arith.addf %10, %43 : vector<8x128xf32>
      %c0_16 = arith.constant 0 : index
      %c0_17 = arith.constant 0 : index
      %45 = vector.load %arg3[%c0_16, %c0_17] : memref<8x128xf32, #tpu.memory_space<vmem>>, vector<8x128xf32>
      tpu.vector_store %arg3[%c0_16, %c0_17], %44 {strides = array<i32>} : memref<8x128xf32, #tpu.memory_space<vmem>>, vector<8x128xf32>,
    } else {
    }
    %c2_i32_2 = arith.constant 2 : i32
    %7 = arith.cmpi slt, %arg0, %c2_i32_2 : i32
    %8 = arith.extui %7 : i1 to i32
    %c0_i32_3 = arith.constant 0 : i32
    %9 = arith.cmpi ne, %8, %c0_i32_3 : i32
    scf.if %9 {
      %c0 = arith.constant 0 : index
      %c0_4 = arith.constant 0 : index
      %10 = vector.load %arg3[%c0, %c0_4] : memref<8x128xf32, #tpu.memory_space<vmem>>, vector<8x128xf32>
      %cst = arith.constant 0.000000e+00 : f32
      %11 = vector.broadcast %cst : f32 to vector<8x128xf32>
      %c0_i32_5 = arith.constant 0 : i32
      %c16_i32_6 = arith.constant 16 : i32
      %12 = arith.muli %c0_i32_5, %c16_i32_6 : i32
      %13 = tpu.assume_multiple %12, 16 : i32
      %14 = arith.index_cast %13 : i32 to index
      %c0_7 = arith.constant 0 : index
      %15 = vector.load %arg1[%14, %c0_7] : memref<16x128xf32, #tpu.memory_space<vmem>>, vector<16x128xf32>
      %16 = tpu.assume_multiple %12, 16 : i32
      %17 = arith.index_cast %16 : i32 to index
      %c0_8 = arith.constant 0 : index
      %18 = vector.load %arg2[%17, %c0_8] : memref<16x128xf32, #tpu.memory_space<vmem>>, vector<16x128xf32>
      %19 = arith.subf %15, %18 : vector<16x128xf32>
      %20 = arith.mulf %19, %19 : vector<16x128xf32>
      %21 = arith.mulf %15, %18 : vector<16x128xf32>
      %cst_9 = arith.constant 0.000000e+00 : f32
      %22 = vector.broadcast %cst_9 : f32 to vector<16x128xf32>
      %23 = arith.cmpf ogt, %21, %22 : vector<16x128xf32>
      %cst_10 = arith.constant 0.000000e+00 : f32
      %24 = vector.broadcast %cst_10 : f32 to vector<16x128xf32>
      %25 = arith.cmpf olt, %21, %24 : vector<16x128xf32>
      %cst_11 = arith.constant 1.100000e+00 : f32
      %26 = vector.broadcast %cst_11 : f32 to vector<16x128xf32>
      %27 = arith.select %25, %26, %21 : vector<16x128xi1>, vector<16x128xf32>
      %cst_12 = arith.constant 1.000000e-01 : f32
      %28 = vector.broadcast %cst_12 : f32 to vector<16x128xf32>
      %29 = arith.select %23, %28, %27 : vector<16x128xi1>, vector<16x128xf32>
      %30 = arith.mulf %20, %29 : vector<16x128xf32>
      %31 = vector.shape_cast %30 : vector<16x128xf32> to vector<2x8x128xf32>
      %cst_13 = arith.constant dense<0.000000e+00> : vector<8x128xf32>
      %32 = vector.multi_reduction <add>, %31, %cst_13 [0] : vector<2x8x128xf32> to vector<8x128xf32>
      %33 = arith.addf %11, %32 : vector<8x128xf32>
      %c1_i32 = arith.constant 1 : i32
      %34 = arith.addf %10, %33 : vector<8x128xf32>
      %c0_14 = arith.constant 0 : index
      %c0_15 = arith.constant 0 : index
      %35 = vector.load %arg3[%c0_14, %c0_15] : memref<8x128xf32, #tpu.memory_space<vmem>>, vector<8x128xf32>
      tpu.vector_store %arg3[%c0_14, %c0_15], %34 {strides = array<i32>} : memref<8x128xf32, #tpu.memory_space<vmem>>, vector<8x128xf32>,
    } else {
    }
    return
  }
  func.func @transform_0(%arg0: i32) -> (i32, i32) {
    %c0_i32 = arith.constant 0 : i32
    %c0_i32_0 = arith.constant 0 : i32
    return %arg0, %c0_i32 : i32, i32
  }
  func.func @transform_1(%arg0: i32) -> (i32, i32) {
    %c0_i32 = arith.constant 0 : i32
    %c0_i32_0 = arith.constant 0 : i32
    return %arg0, %c0_i32 : i32, i32
  }
  func.func @transform_2(%arg0: i32) -> (i32, i32) {
    %c0_i32 = arith.constant 0 : i32
    %c0_i32_0 = arith.constant 0 : i32
    %c0_i32_1 = arith.constant 0 : i32
    return %c0_i32, %c0_i32_0 : i32, i32
  }
}

</mosaic_0001>

<llo_original>
// kernel: tpu_custom_call.1
$region0: #{tpu_custom_call.1}
  #allocation0 [shape = 'u32[]', space=smem, size = 0x4, offset = 0x4, fixed_abs, tag = 'smem constant byte address 0x4 - core index']
  #allocation1 [shape = 'u32[144,128]{1,0:T(1,128)}', space=vmem, size = 0x12000, scoped, tag = 'internal scratch']
  %s0 = inlined_call_operand.hbm [shape: f32[40,128], index: 0, kind: input, shape index: {}]
  %s1 = inlined_call_operand.hbm [shape: f32[40,128], index: 1, kind: input, shape index: {}]
  %s2 = inlined_call_operand.hbm [shape: f32[8,128], index: 2, kind: output, shape index: {}]
  %s3 = sld [smem:[#allocation0]]
  $region61: #{tpu_custom_call.1} parent=0
    _
  %s5 = ssub.s32 1, %s3
  %s6 = scalar_select 0, %s5, %s3
  $region1: #{tpu_custom_call.1} parent=0
    #allocation2 [shape = 'u8[16384]{0}', space=vmem, size = 0x4000, scoped, tag = 'input window, operand 0']
    #allocation3 [shape = 's32[2]{0}', space=sflag, size = 0x8, scoped, tag = 'scoped memory for tpu_custom_call.1']
    #allocation4 [shape = 's32[2]{0}', space=sflag, size = 0x8, scoped, tag = 'scoped memory for tpu_custom_call.1']
    #allocation5 [shape = 'u8[16384]{0}', space=vmem, size = 0x4000, scoped, tag = 'input window, operand 1']
    #allocation6 [shape = 's32[2]{0}', space=sflag, size = 0x8, scoped, tag = 'scoped memory for tpu_custom_call.1']
    #allocation7 [shape = 'u8[4096]{0}', space=vmem, size = 0x1000, scoped, tag = 'output window, operand 0, single buffered']
    %7 = vsyncpa [#allocation3], 0
    %s8 = scalar_lea.sflag [#allocation3], 1
    %9 = vsyncpa %s8, 0
    %10 = vsyncpa [#allocation6], 0
    %s11 = scalar_lea.sflag [#allocation6], 1
    %12 = vsyncpa %s11, 0
    %13 = vsyncpa [#allocation4], 0
    loop: start=0, step=1, limit=5
    $region2: #{tpu_custom_call.1} parent=1 // loop_pre_header
      _
    $region3: #{tpu_custom_call.1} parent=1 // loop_header
      %s15 = sphi 0, %s19
      %p16 = scmp.ge.s32.totalorder %s15, 5
      %s25 = sphi 0, %s27
      %s28 = sphi 0, %s25
      %s29 = sphi 0, %s28
      %s45 = sphi 0, %s29
      %s51 = sphi 0, %s53
      %s54 = sphi 0, %s51
      %s55 = sphi 0, %s54
      %s71 = sphi 0, %s55
      %s75 = sphi 0, %s75
      %s77 = sphi 0, %s75
      %s78 = sphi 0, %s77
      %s92 = sphi 0, %s78
    $region4: #{tpu_custom_call.1} parent=1 // loop_header_branch
      %18 = sbr.rel (%p16) target = $region8
    $region5: #{tpu_custom_call.1} parent=1 // loop_body
      %s20 = ssub.s32 %s15, 1
      %s21 = ssub.s32 %s15, 2
      %s22 = sadd.s32 %s15, 1
      %s23 = ssub.s32 %s15, %s22
      %p24 = scmp.eq.s32.totalorder %s23, 0
      %s26 = sadd.s32 %s25, 1
      %s27 = scalar_select %p24, %s25, %s26
      %p30 = pneg %p24
      %p31 = scmp.eq.s32.totalorder %s15, 2
      %p32 = por %p30, %p31
      %p33 = scmp.ne.s32.totalorder %s25, %s28
      %p34 = scmp.eq.s32.totalorder %s15, 0
      %p35 = por %p33, %p34
      %p36 = scmp.ne.s32.totalorder %s25, %s28
      %p37 = scmp.eq.s32.totalorder %s20, 2
      %p38 = por %p36, %p37
      %p39 = scmp.ne.s32.totalorder %s28, %s29
      %p40 = scmp.eq.s32.totalorder %s20, 0
      %p41 = por %p39, %p40
      %p42 = scmp.ne.s32.totalorder %s28, %s29
      %p43 = scmp.eq.s32.totalorder %s21, 2
      %p44 = por %p42, %p43
      %p46 = scmp.ne.s32.totalorder %s29, %s45
      %p47 = scmp.eq.s32.totalorder %s21, 0
      %p48 = por %p46, %p47
      %s49 = ssub.s32 %s15, %s22
      %p50 = scmp.eq.s32.totalorder %s49, 0
      %s52 = sadd.s32 %s51, 1
      %s53 = scalar_select %p50, %s51, %s52
      %p56 = pneg %p50
      %p57 = scmp.eq.s32.totalorder %s15, 2
      %p58 = por %p56, %p57
      %p59 = scmp.ne.s32.totalorder %s51, %s54
      %p60 = scmp.eq.s32.totalorder %s15, 0
      %p61 = por %p59, %p60
      %p62 = scmp.ne.s32.totalorder %s51, %s54
      %p63 = scmp.eq.s32.totalorder %s20, 2
      %p64 = por %p62, %p63
      %p65 = scmp.ne.s32.totalorder %s54, %s55
      %p66 = scmp.eq.s32.totalorder %s20, 0
      %p67 = por %p65, %p66
      %p68 = scmp.ne.s32.totalorder %s54, %s55
      %p69 = scmp.eq.s32.totalorder %s21, 2
      %p70 = por %p68, %p69
      %p72 = scmp.ne.s32.totalorder %s55, %s71
      %p73 = scmp.eq.s32.totalorder %s21, 0
      %p74 = por %p72, %p73
      %s76 = sadd.s32 %s75, 1
      %p79 = scmp.eq.s32.totalorder %s15, 2
      %p80 = scmp.ne.s32.totalorder %s75, %s77
      %p81 = scmp.eq.s32.totalorder %s15, 0
      %p82 = por %p80, %p81
      %p83 = scmp.ne.s32.totalorder %s75, %s77
      %p84 = scmp.eq.s32.totalorder %s20, 2
      %p85 = por %p83, %p84
      %p86 = scmp.ne.s32.totalorder %s77, %s78
      %p87 = scmp.eq.s32.totalorder %s20, 0
      %p88 = por %p86, %p87
      %p89 = scmp.ne.s32.totalorder %s77, %s78
      %p90 = scmp.eq.s32.totalorder %s21, 2
      %p91 = por %p89, %p90
      %p93 = scmp.ne.s32.totalorder %s78, %s92
      %p94 = scmp.eq.s32.totalorder %s21, 0
      %p95 = por %p93, %p94
      %p96 = scmp.le.s32.totalorder 1, %s15
      %p97 = scmp.lt.s32.totalorder %s15, 4
      %p98 = pnand %p96, %p97
      %p99 = pneg %p98
      // Predicated region
      $region9: #{tpu_custom_call.1} parent=5 // pred_check
        _
      $region10: #{tpu_custom_call.1} parent=5 // pred_check_branch
        %101 = sbr.rel (%p98) target = $region12
      $region11: #{tpu_custom_call.1} parent=5 // pred_region
        %s102 = ssub.s32 %s15, 1
      $region12: #{tpu_custom_call.1} parent=5 // pred_fallthru
        _
      %p103 = scmp.lt.s32.totalorder %s15, 3
      // Predicated region
      $region13: #{tpu_custom_call.1} parent=5 // pred_check
        %p104 = pneg %p103
      $region14: #{tpu_custom_call.1} parent=5 // pred_check_branch
        %106 = sbr.rel (%p104) target = $region16
      $region15: #{tpu_custom_call.1} parent=5 // pred_region
        // Predicated region
        $region17: #{tpu_custom_call.1} parent=15 // pred_check
          %p107 = pneg %p35
        $region18: #{tpu_custom_call.1} parent=15 // pred_check_branch
          %109 = sbr.rel (%p107) target = $region20
        $region19: #{tpu_custom_call.1} parent=15 // pred_region
          %s110 = sand.u32 %s25, 1
          %s111 = scalar_lea.sflag [#allocation3], %s110
          %s112 = sand.u32 %s25, 1
          %s113 = smul.addr %s112, 16
          %s114 = scalar_lea.vmem [#allocation2], %s113
          %s115 = smul.u32 2, %s15
          %s116 = ssub.s32 5, %s115
          %p117 = scmp.lt.s32.totalorder %s116, 2
          %s118 = scalar_select %p117, %s116, 2
          %s119 = smul.u32 128, %s118
          %s121 = ssub.s32 256, %s119
          %122 = vsyncadd %s111, %s121
          %p123 = scmp.ne.s32.totalorder 0, %s119
          %s124 = smul.addr %s115, 128
          %s125 = scalar_lea.hbm %s0, %s124
          %s126 = smul.u32 8, %s118
          %s127 = sshll.u32 %s114, 4
          %s128 = int_to_ptr.vmem [resolvable:$true] %s127
          %s129 = sshll.u32 %s126, 4
          %133 = dma.hbm_to_vmem [thread:$0]  (%p123), %s125, %s129, %s128, %s111, 128, 128, 8
        $region20: #{tpu_custom_call.1} parent=15 // pred_fallthru
          _
        // Predicated region
        $region21: #{tpu_custom_call.1} parent=15 // pred_check
          %p134 = pneg %p61
        $region22: #{tpu_custom_call.1} parent=15 // pred_check_branch
          %136 = sbr.rel (%p134) target = $region24
        $region23: #{tpu_custom_call.1} parent=15 // pred_region
          %s137 = sand.u32 %s51, 1
          %s138 = scalar_lea.sflag [#allocation6], %s137
          %s139 = sand.u32 %s51, 1
          %s140 = smul.addr %s139, 16
          %s141 = scalar_lea.vmem [#allocation5], %s140
          %s142 = smul.u32 2, %s15
          %s143 = ssub.s32 5, %s142
          %p144 = scmp.lt.s32.totalorder %s143, 2
          %s145 = scalar_select %p144, %s143, 2
          %s146 = smul.u32 128, %s145
          %s148 = ssub.s32 256, %s146
          %149 = vsyncadd %s138, %s148
          %p150 = scmp.ne.s32.totalorder 0, %s146
          %s151 = smul.addr %s142, 128
          %s152 = scalar_lea.hbm %s1, %s151
          %s153 = smul.u32 8, %s145
          %s154 = sshll.u32 %s141, 4
          %s155 = int_to_ptr.vmem [resolvable:$true] %s154
          %s156 = sshll.u32 %s153, 4
          %160 = dma.hbm_to_vmem [thread:$0]  (%p150), %s152, %s156, %s155, %s138, 128, 128, 8
        $region24: #{tpu_custom_call.1} parent=15 // pred_fallthru
          _
      $region16: #{tpu_custom_call.1} parent=5 // pred_fallthru
        _
      %p161 = scmp.le.s32.totalorder 1, %s15
      %p162 = scmp.lt.s32.totalorder %s15, 4
      %p163 = pnand %p161, %p162
      %p164 = pneg %p163
      // Predicated region
      $region25: #{tpu_custom_call.1} parent=5 // pred_check
        _
      $region26: #{tpu_custom_call.1} parent=5 // pred_check_branch
        %166 = sbr.rel (%p163) target = $region28
      $region27: #{tpu_custom_call.1} parent=5 // pred_region
        %s167 = ssub.s32 %s15, 1
        %s168 = sand.u32 %s28, 1
        %s169 = scalar_lea.sflag [#allocation3], %s168
        %s170 = sand.u32 %s28, 1
        %s171 = smul.addr %s170, 16
        %s172 = scalar_lea.vmem [#allocation2], %s171
        // Predicated region
        $region29: #{tpu_custom_call.1} parent=27 // pred_check
          %p173 = pneg %p41
        $region30: #{tpu_custom_call.1} parent=27 // pred_check_branch
          %175 = sbr.rel (%p173) target = $region32
        $region31: #{tpu_custom_call.1} parent=27 // pred_region
          %176 = dma.done %s169, 256
        $region32: #{tpu_custom_call.1} parent=27 // pred_fallthru
          _
        %s177 = sand.u32 %s54, 1
        %s178 = scalar_lea.sflag [#allocation6], %s177
        %s179 = sand.u32 %s54, 1
        %s180 = smul.addr %s179, 16
        %s181 = scalar_lea.vmem [#allocation5], %s180
        // Predicated region
        $region33: #{tpu_custom_call.1} parent=27 // pred_check
          %p182 = pneg %p67
        $region34: #{tpu_custom_call.1} parent=27 // pred_check_branch
          %184 = sbr.rel (%p182) target = $region36
        $region35: #{tpu_custom_call.1} parent=27 // pred_region
          %185 = dma.done %s178, 256
        $region36: #{tpu_custom_call.1} parent=27 // pred_fallthru
          _
        %s186 = sand.u32 %s28, 1
        %s187 = scalar_lea.sflag [#allocation3], %s186
        %s188 = sand.u32 %s28, 1
        %s189 = smul.addr %s188, 16
        %s190 = scalar_lea.vmem [#allocation2], %s189
        %p191 = pneg %p41
        %p192 = pneg %p38
        %s193 = sand.u32 %s54, 1
        %s194 = scalar_lea.sflag [#allocation6], %s193
        %s195 = sand.u32 %s54, 1
        %s196 = smul.addr %s195, 16
        %s197 = scalar_lea.vmem [#allocation5], %s196
        %p198 = pneg %p67
        %p199 = pneg %p64
        %p200 = pneg %p88
        %p201 = pneg %p85
        %s202 = smul.u32 2, %s20
        %s203 = ssub.s32 5, %s202
        %p204 = scmp.lt.s32.totalorder %s203, 2
        %s205 = scalar_select %p204, %s203, 2
        %s206 = smul.u32 128, %s205
        %s207 = smul.u32 2, %s20
        %s208 = ssub.s32 5, %s207
        %p209 = scmp.lt.s32.totalorder %s208, 2
        %s210 = scalar_select %p209, %s208, 2
        %s211 = smul.u32 128, %s210
        %s212 = smul.u32 %s20, 16
        %p213 = scmp.eq.s32.totalorder %s20, 0
        // Predicated region
        $region37: #{tpu_custom_call.1} parent=27 // pred_check
          %p214 = pneg %p213
        $region38: #{tpu_custom_call.1} parent=27 // pred_check_branch
          %216 = sbr.rel (%p214) target = $region40
        $region39: #{tpu_custom_call.1} parent=27 // pred_region
          %217 = vst [vmem:[#allocation7] sm:$0xff] 0.0
        $region40: #{tpu_custom_call.1} parent=27 // pred_fallthru
          _
        %p218 = scmp.eq.s32.totalorder %s20, 2
        // Predicated region
        $region41: #{tpu_custom_call.1} parent=27 // pred_check
          %p219 = pneg %p218
        $region42: #{tpu_custom_call.1} parent=27 // pred_check_branch
          %221 = sbr.rel (%p219) target = $region44
        $region43: #{tpu_custom_call.1} parent=27 // pred_region
          %v222 = vld [vmem:[#allocation7] sm:$0xff]
          %v223 = vld [vmem:[%s172] sm:$0xff]
          %v224 = vld [vmem:[%s172 + $0x8] sm:$0xff]
          %v225 = vld [vmem:[%s181] sm:$0xff]
          %v226 = vld [vmem:[%s181 + $0x8] sm:$0xff]
          %v227 = vlaneseq
          %v228 = vshrl.u32 %v227, 7
          %v229 = vadd.s32 %v228, 8
          %v230 = vstv %s212
          %v231 = vadd.s32 %v228, %v230
          %v232 = vadd.s32 %v229, %v230
          %vm233 = vcmp.lt.s32.totalorder %v231, 40
          %vm234 = vcmp.lt.s32.totalorder %v232, 40
          %v235 = vsel %vm233, %v223, 0.0
          %v236 = vsel %vm234, %v224, 0.0
          %v237 = vsel %vm233, %v225, 0.0
          %v238 = vsel %vm234, %v226, 0.0
          %v239 = vsub.f32 %v235, %v237
          %v240 = vsub.f32 %v236, %v238
          %v241 = vmul.f32 %v239, %v239
          %v242 = vmul.f32 %v240, %v240
          %v243 = vmul.f32 %v235, %v237
          %v244 = vmul.f32 %v236, %v238
          %vm245 = vcmp.gt.f32.partialorder %v243, 0.0
          %vm246 = vcmp.gt.f32.partialorder %v244, 0.0
          %vm247 = vcmp.lt.f32.partialorder %v243, 0.0
          %vm248 = vcmp.lt.f32.partialorder %v244, 0.0
          %v249 = vsel %vm247, 1.1, %v243
          %v250 = vsel %vm248, 1.1, %v244
          %v251 = vsel %vm245, 0.1, %v249
          %v252 = vsel %vm246, 0.1, %v250
          %v253 = vmul.f32 %v241, %v251
          %v254 = vmul.f32 %v242, %v252
          %v255 = vadd.f32 %v253, %v254
          %v256 = vadd.f32 %v255, 0.0
          %v257 = vadd.f32 %v222, %v256
          %258 = vst [vmem:[#allocation7] sm:$0xff] %v257
        $region44: #{tpu_custom_call.1} parent=27 // pred_fallthru
          _
        %p259 = scmp.lt.s32.totalorder %s20, 2
        // Predicated region
        $region45: #{tpu_custom_call.1} parent=27 // pred_check
          %p260 = pneg %p259
        $region46: #{tpu_custom_call.1} parent=27 // pred_check_branch
          %262 = sbr.rel (%p260) target = $region48
        $region47: #{tpu_custom_call.1} parent=27 // pred_region
          %v263 = vld [vmem:[#allocation7] sm:$0xff]
          %v264 = vld [vmem:[%s172] sm:$0xff]
          %v265 = vld [vmem:[%s172 + $0x8] sm:$0xff]
          %v266 = vld [vmem:[%s181] sm:$0xff]
          %v267 = vld [vmem:[%s181 + $0x8] sm:$0xff]
          %v268 = vsub.f32 %v264, %v266
          %v269 = vsub.f32 %v265, %v267
          %v270 = vmul.f32 %v268, %v268
          %v271 = vmul.f32 %v269, %v269
          %v272 = vmul.f32 %v264, %v266
          %v273 = vmul.f32 %v265, %v267
          %vm274 = vcmp.gt.f32.partialorder %v272, 0.0
          %vm275 = vcmp.gt.f32.partialorder %v273, 0.0
          %vm276 = vcmp.lt.f32.partialorder %v272, 0.0
          %vm277 = vcmp.lt.f32.partialorder %v273, 0.0
          %v278 = vsel %vm276, 1.1, %v272
          %v279 = vsel %vm277, 1.1, %v273
          %v280 = vsel %vm274, 0.1, %v278
          %v281 = vsel %vm275, 0.1, %v279
          %v282 = vmul.f32 %v270, %v280
          %v283 = vmul.f32 %v271, %v281
          %v284 = vadd.f32 %v282, %v283
          %v285 = vadd.f32 %v284, 0.0
          %v286 = vadd.f32 %v263, %v285
          %287 = vst [vmem:[#allocation7] sm:$0xff] %v286
        $region48: #{tpu_custom_call.1} parent=27 // pred_fallthru
          _
        // Predicated region
        $region49: #{tpu_custom_call.1} parent=27 // pred_check
          %p288 = pneg %p85
        $region50: #{tpu_custom_call.1} parent=27 // pred_check_branch
          %290 = sbr.rel (%p288) target = $region52
        $region51: #{tpu_custom_call.1} parent=27 // pred_region
          %s292 = ssub.s32 128, 128
          %293 = vsyncadd [#allocation4], %s292
          %s295 = sshll.u32 [#allocation7], 4
          %s296 = int_to_ptr.vmem [resolvable:$true] %s295
          %298 = dma.vmem_to_hbm [thread:$0]  %s296, 128, %s2, [#allocation4]
        $region52: #{tpu_custom_call.1} parent=27 // pred_fallthru
          _
        // Predicated region
        $region53: #{tpu_custom_call.1} parent=27 // pred_check
          %p299 = pneg %p85
        $region54: #{tpu_custom_call.1} parent=27 // pred_check_branch
          %301 = sbr.rel (%p299) target = $region56
        $region55: #{tpu_custom_call.1} parent=27 // pred_region
          %302 = dma.done [#allocation4], 128
        $region56: #{tpu_custom_call.1} parent=27 // pred_fallthru
          _
      $region28: #{tpu_custom_call.1} parent=5 // pred_fallthru
        _
      %p303 = scmp.le.s32.totalorder 2, %s15
      // Predicated region
      $region57: #{tpu_custom_call.1} parent=5 // pred_check
        %p304 = pneg %p303
      $region58: #{tpu_custom_call.1} parent=5 // pred_check_branch
        %306 = sbr.rel (%p304) target = $region60
      $region59: #{tpu_custom_call.1} parent=5 // pred_region
        %s307 = ssub.s32 %s15, 2
      $region60: #{tpu_custom_call.1} parent=5 // pred_fallthru
        _
    $region6: #{tpu_custom_call.1} parent=1 // loop_footer
      %s19 = sadd.s32 1, %s15
    $region7: #{tpu_custom_call.1} parent=1 // loop_footer_branch
      %14 = sbr.rel target = $region3
    $region8: #{tpu_custom_call.1} parent=1 // loop_exit
      _
    %308 = vsyncpa [#allocation3], 1
    %s309 = scalar_lea.sflag [#allocation3], 1
    %310 = vsyncpa %s309, 1
    %311 = vsyncpa [#allocation6], 1
    %s312 = scalar_lea.sflag [#allocation6], 1
    %313 = vsyncpa %s312, 1
    %314 = vsyncpa [#allocation4], 1
    %s315 = scalar_lea.sflag [#allocation4], 1
    %316 = vsyncpa %s315, 1

</llo_original>
